<compile_context>
chip_gen: v5e
topology: v5e:2x2
jax: 0.10.0
libtpu: 0.0.40
codegen_flags: <defaults>
</compile_context>

<pallas_src>
import functools

import jax
import jax.numpy as jnp
from jax.experimental import pallas as pl
from jax.experimental.pallas import tpu as pltpu


def _round_up(n, m):
    return (n + m - 1) // m * m


def _pg_kernel(x_ref, w_ref, b_ref, ids_ref, scores_ref, ctx_ref, out_ref,
               interp_sc, genp_sc, alphas_sc, *, vg, seq_len):
    j = pl.program_id(1)
    tile_b, tile_v = out_ref.shape
    vg_ext = ids_ref.shape[0]

    # ---- once per B tile (first Vout tile): fused matmul + softmaxes, cached ----
    @pl.when(j == 0)
    def _():
        # One bf16 MXU matmul (f32 accumulate): cols [0, vg) are the gen logits,
        # col vg is the interp logit.  Bias add and softmax math stay in f32.
        logits = jnp.dot(x_ref[...], w_ref[...],
                         preferred_element_type=jnp.float32) + b_ref[...]
        interp_sc[...] = jax.nn.sigmoid(logits[:, vg:vg + 1])        # (tile_b, 1)

        # softmax over the real gen columns only (interp / padding cols masked).
        # Keep -1e30 masking in f32 (would overflow in bf16).
        col = jax.lax.broadcasted_iota(jnp.int32, logits.shape, 1)
        masked = jnp.where(col < vg, logits, -1e30)
        m = jnp.max(masked, axis=-1, keepdims=True)
        e = jnp.exp(masked - m)
        gp = e * pl.reciprocal(jnp.sum(e, axis=-1, keepdims=True), approx=False)
        genp_sc[...] = gp.astype(genp_sc.dtype)                      # bf16 scratch

        s = scores_ref[...].astype(jnp.float32)
        ms = jnp.max(s, axis=-1, keepdims=True)
        es = jnp.exp(s - ms)
        alphas_sc[...] = es * pl.reciprocal(jnp.sum(es, axis=-1, keepdims=True),
                                            approx=False)
        # TODO(synk): mask / gen_zero additive log-masking and the all-(-inf)
        # "rescue" branches of the torch module are not implemented (mask=None,
        # gen_zero=None path only).
        # TODO(synk): for very large gen vocabularies, stream the Vg axis
        # flash-style (chunked x@W + online softmax) instead of a fully resident
        # W_ext and (tile_b, vg_ext) temporaries (v7x 64 MiB VMEM budget).

    v_start = j * tile_v

    # ---- gen scatter: synthesize the bf16 one-hot map tile in-kernel, MXU matmul ----
    ids = ids_ref[...]                                               # (vg_ext, 1) i32
    v_iota = jax.lax.broadcasted_iota(jnp.int32, (vg_ext, tile_v), 1) + v_start
    map_tile = (ids == v_iota).astype(jnp.bfloat16)                  # exact in bf16
    out_gen = jnp.dot(genp_sc[...], map_tile,
                      preferred_element_type=jnp.float32)            # (tile_b, tile_v)

    # ---- pointer scatter: unrolled S-loop into a (tile_b, tile_v) accumulator ----
    # TODO(synk): for Vout >> S*tile_v, prefetch a per-(B,Vout)-tile "any id lands
    # here" flag (PrefetchScalarGridSpec) and pl.when-skip this loop on empty tiles.
    alphas = alphas_sc[...]                                          # (tile_b, S) f32
    ctx = ctx_ref[...]                                               # (tile_b, S) i32
    seq_iota = jax.lax.broadcasted_iota(jnp.int32, (tile_b, seq_len), 1)
    lane_v = jax.lax.broadcasted_iota(jnp.int32, (tile_b, tile_v), 1) + v_start

    def body(s, acc):
        # TODO(synk): try a direct dynamic 1-lane slice (alphas_sc[:, pl.ds(s, 1)])
        # to remove the compare + XLU reduces; keeping the where-path as it is
        # verified to lower cleanly.
        sel = seq_iota == s                                          # one lane / row
        a_col = jnp.sum(jnp.where(sel, alphas, 0.0), axis=1, keepdims=True)
        c_col = jnp.sum(jnp.where(sel, ctx, 0), axis=1, keepdims=True)
        return acc + jnp.where(c_col == lane_v, a_col, 0.0)

    out_ptr = jax.lax.fori_loop(
        0, seq_len, body, jnp.zeros((tile_b, tile_v), jnp.float32),
        unroll=min(8, seq_len))

    # fused combine: interp*gen + (1-interp)*ptr == ptr + interp*(gen - ptr)
    interp = interp_sc[...]
    out_ref[...] = (out_ptr + interp * (out_gen - out_ptr)).astype(out_ref.dtype)


def pointer_generator_out(x, scores, ctx_inp, w_prob, b_prob, w_gen, b_gen,
                          gen_to_out, inp_to_out, outsize,
                          tile_v=256, max_tile_b=128):
    """x:(B,D) float, scores:(B,S) float, ctx_inp:(B,S) int -> (B, outsize)."""
    B, D = x.shape
    S = scores.shape[1]
    Vg = w_gen.shape[1]
    f32 = jnp.float32
    bf16 = jnp.bfloat16

    tile_b = min(max_tile_b, _round_up(B, 8))
    b_pad = _round_up(B, tile_b)
    # v7x has 2 TensorCores and only the B axis is "parallel": if the batch
    # allows, split it so the second core gets work.
    if b_pad // tile_b == 1 and tile_b >= 16:
        tile_b //= 2
        b_pad = _round_up(B, tile_b)
    v_pad = _round_up(outsize, tile_v)        # lane-dense output tiles
    vg_ext = _round_up(Vg + 1, 128)           # gen cols + folded interp col + pad

    # ---- host glue (id-sized only; no (Vg, Vout) map is ever built) ----
    # MXU feeds (x, W_ext) in bf16; bias kept f32 (added to the f32 accumulator).
    w_ext = jnp.zeros((D, vg_ext), bf16).at[:, :Vg].set(w_gen.astype(bf16))
    w_ext = w_ext.at[:, Vg].set(w_prob.reshape(D).astype(bf16))
    b_ext = jnp.zeros((1, vg_ext), f32).at[0, :Vg].set(b_gen.reshape(Vg).astype(f32))
    b_ext = b_ext.at[0, Vg].set(b_prob.reshape(()).astype(f32))
    # gen_to_out ids as a column vector; interp / padding columns never match.
    gen_ids = jnp.full((vg_ext, 1), v_pad, jnp.int32)
    gen_ids = gen_ids.at[:Vg, 0].set(gen_to_out.reshape(-1).astype(jnp.int32))
    # pointer ids mapped into the output vocabulary.
    ctx_out = jnp.take(inp_to_out, ctx_inp).astype(jnp.int32)        # (B, S)

    x_p = jnp.zeros((b_pad, D), bf16).at[:B].set(x.astype(bf16))
    scores_p = jnp.zeros((b_pad, S), f32).at[:B].set(scores.astype(f32))
    ctx_p = jnp.full((b_pad, S), v_pad, jnp.int32).at[:B].set(ctx_out)

    grid = (b_pad // tile_b, v_pad // tile_v)
    kernel = functools.partial(_pg_kernel, vg=Vg, seq_len=S)

    # Grid-invariant operands (index_map always (0,0)): single-buffer them so the
    # pipeline does not hold two copies of W_ext in VMEM.
    single = pl.Buffered(1)

    out = pl.pallas_call(
        kernel,
        out_shape=jax.ShapeDtypeStruct((b_pad, v_pad), x.dtype),
        grid=grid,
        in_specs=[
            pl.BlockSpec((tile_b, D), lambda i, j: (i, 0)),       # x (bf16)
            pl.BlockSpec((D, vg_ext), lambda i, j: (0, 0),
                         pipeline_mode=single),                   # W_ext (bf16)
            pl.BlockSpec((1, vg_ext), lambda i, j: (0, 0),
                         pipeline_mode=single),                   # b_ext (f32)
            pl.BlockSpec((vg_ext, 1), lambda i, j: (0, 0),
                         pipeline_mode=single),                   # gen_to_out ids
            pl.BlockSpec((tile_b, S), lambda i, j: (i, 0)),       # scores (f32)
            pl.BlockSpec((tile_b, S), lambda i, j: (i, 0)),       # ctx out-vocab ids
        ],
        out_specs=pl.BlockSpec((tile_b, tile_v), lambda i, j: (i, j)),
        scratch_shapes=[
            pltpu.VMEM((tile_b, 1), f32),          # interp
            pltpu.VMEM((tile_b, vg_ext), bf16),    # gen_probs (bf16 MXU feed)
            pltpu.VMEM((tile_b, S), f32),          # alphas
        ],
        compiler_params=pltpu.CompilerParams(
            dimension_semantics=("parallel", "arbitrary"),
            # 48 MiB: leaves headroom under v7x's 64 MiB physical VMEM; well
            # within v5e/v6e's 128 MiB.
            vmem_limit_bytes=48 * 1024 * 1024),
    )(x_p, w_ext, b_ext, gen_ids, scores_p, ctx_p)

    return out[:B, :outsize]


if __name__ == "__main__":
    B, D, S = 8, 32, 8          # batch, input dim, ctx seq len
    Vg, Vi, Vout = 64, 32, 128  # gen vocab, input vocab, output vocab sizes

    key = jax.random.PRNGKey(0)
    k = jax.random.split(key, 6)
    x = jax.random.normal(k[0], (B, D), jnp.float32)
    scores = jax.random.normal(k[1], (B, S), jnp.float32)
    ctx_inp = jax.random.randint(k[2], (B, S), 0, Vi, jnp.int32)

    # Deterministic parameters (linear gen_prob_comp + sigmoid; linear gen_out).
    w_prob = jax.random.normal(k[3], (D, 1), jnp.float32) * 0.1
    b_prob = jnp.zeros((1,), jnp.float32)
    w_gen = jax.random.normal(k[4], (D, Vg), jnp.float32) * 0.1
    b_gen = jnp.zeros((Vg,), jnp.float32)

    # Deterministic synthetic dictionaries (stand-ins for outdic/gen_outD/inpdic):
    #   gen id v  -> out id (2v + 1) % Vout
    #   inp id v  -> out id (5v + 2) % Vout
    gen_to_out = ((2 * jnp.arange(Vg) + 1) % Vout)[None, :].astype(jnp.int32)
    inp_to_out = ((5 * jnp.arange(Vi) + 2) % Vout).astype(jnp.int32)

    out = pointer_generator_out(x, scores, ctx_inp, w_prob, b_prob, w_gen,
                                b_gen, gen_to_out, inp_to_out, Vout)
    out = jax.block_until_ready(out)

    # Pure-JAX reference for correctness.
    interp = jax.nn.sigmoid(x @ w_prob + b_prob)
    gen_probs = jax.nn.softmax(x @ w_gen + b_gen, axis=-1)
    rows = jnp.arange(B)[:, None]
    out_gen = jnp.zeros((B, Vout), jnp.float32).at[
        rows, jnp.broadcast_to(gen_to_out, (B, Vg))].add(gen_probs)
    alphas = jax.nn.softmax(scores, axis=-1)
    ctx_out_ref = inp_to_out[ctx_inp]
    out_ptr = jnp.zeros((B, Vout), jnp.float32).at[rows, ctx_out_ref].add(alphas)
    ref = interp * out_gen + (1.0 - interp) * out_ptr

    assert out.shape == (B, Vout)
    # atol covers the bf16 MXU feeds (x@W and the one-hot scatter matmul).
    err = float(jnp.max(jnp.abs(out - ref)))
    assert jnp.allclose(out, ref, atol=5e-3), err
    print("KERNEL_OK")
</pallas_src>

<mosaic_0001>
module attributes {stable_mosaic.version = 11 : i64} {
  func.func @_pg_kernel(%arg0: i32, %arg1: i32, %arg2: memref<8x32xbf16, #tpu.memory_space<vmem>>, %arg3: memref<32x128xbf16, #tpu.memory_space<vmem>>, %arg4: memref<1x128xf32, #tpu.memory_space<vmem>>, %arg5: memref<128x1xi32, #tpu.memory_space<vmem>>, %arg6: memref<8x8xf32, #tpu.memory_space<vmem>>, %arg7: memref<8x8xi32, #tpu.memory_space<vmem>>, %arg8: memref<8x256xf32, #tpu.memory_space<vmem>>, %arg9: memref<8x1xf32, #tpu.memory_space<vmem>>, %arg10: memref<8x128xbf16, #tpu.memory_space<vmem>>, %arg11: memref<8x8xf32, #tpu.memory_space<vmem>>) attributes {dimension_semantics = [#tpu.dimension_semantics<parallel>, #tpu.dimension_semantics<arbitrary>], iteration_bounds = array<i64: 1, 1>, scalar_prefetch = 0 : i64, scratch_operands = 3 : i64, tpu.core_type = #tpu.core_type<tc>, window_params = [{transform_indices = @transform_0, window_bounds = array<i64: 8, 32>}, {pipeline_mode = #tpu.pipeline_mode<synchronous>, transform_indices = @transform_1, window_bounds = array<i64: 32, 128>}, {pipeline_mode = #tpu.pipeline_mode<synchronous>, transform_indices = @transform_2, window_bounds = array<i64: 1, 128>}, {pipeline_mode = #tpu.pipeline_mode<synchronous>, transform_indices = @transform_3, window_bounds = array<i64: 128, 1>}, {transform_indices = @transform_4, window_bounds = array<i64: 8, 8>}, {transform_indices = @transform_5, window_bounds = array<i64: 8, 8>}, {transform_indices = @transform_6, window_bounds = array<i64: 8, 256>}]} {
    %c0_i32 = arith.constant 0 : i32
    %0 = arith.cmpi eq, %arg1, %c0_i32 : i32
    %1 = arith.extui %0 : i1 to i32
    %c0_i32_0 = arith.constant 0 : i32
    %2 = arith.cmpi ne, %1, %c0_i32_0 : i32
    scf.if %2 {
      %c0_54 = arith.constant 0 : index
      %c0_55 = arith.constant 0 : index
      %164 = vector.load %arg2[%c0_54, %c0_55] : memref<8x32xbf16, #tpu.memory_space<vmem>>, vector<8x32xbf16>
      %c0_56 = arith.constant 0 : index
      %c0_57 = arith.constant 0 : index
      %165 = vector.load %arg3[%c0_56, %c0_57] : memref<32x128xbf16, #tpu.memory_space<vmem>>, vector<32x128xbf16>
      %cst_58 = arith.constant dense<0.000000e+00> : vector<8x128xf32>
      %166 = tpu.matmul %164, %165, %cst_58 {dimension_numbers = #tpu.dot_dimension_numbers<[1], [0], [0], [1], [0, 0, 1, 1], [], []>} : vector<8x32xbf16>, vector<32x128xbf16>, vector<8x128xf32> -> vector<8x128xf32>
      %c0_59 = arith.constant 0 : index
      %c0_60 = arith.constant 0 : index
      %167 = vector.load %arg4[%c0_59, %c0_60] : memref<1x128xf32, #tpu.memory_space<vmem>>, vector<1x128xf32>
      %168 = vector.broadcast %167 : vector<1x128xf32> to vector<8x128xf32>
      %169 = arith.addf %166, %168 : vector<8x128xf32>
      %170 = vector.extract_strided_slice %169 {offsets = [0, 64], sizes = [8, 1], strides = [1, 1]} : vector<8x128xf32> to vector<8x1xf32>
      %171 = arith.negf %170 : vector<8x1xf32>
      %172 = math.exp %171 : vector<8x1xf32>
      %cst_61 = arith.constant 1.000000e+00 : f32
      %173 = vector.broadcast %cst_61 : f32 to vector<8x1xf32>
      %174 = arith.addf %173, %172 : vector<8x1xf32>
      %175 = arith.divf %173, %174 : vector<8x1xf32>
      %c0_62 = arith.constant 0 : index
      %c0_63 = arith.constant 0 : index
      %176 = vector.load %arg9[%c0_62, %c0_63] : memref<8x1xf32, #tpu.memory_space<vmem>>, vector<8x1xf32>
      tpu.vector_store %arg9[%c0_62, %c0_63], %175 {strides = array<i32>} : memref<8x1xf32, #tpu.memory_space<vmem>>, vector<8x1xf32>,
      %177 = tpu.iota {dimensions = array<i32: 1>} : vector<8x128xi32>
      %c64_i32 = arith.constant 64 : i32
      %178 = vector.broadcast %c64_i32 : i32 to vector<8x128xi32>
      %179 = arith.cmpi slt, %177, %178 : vector<8x128xi32>
      %cst_64 = arith.constant -1.000000e+30 : f32
      %180 = vector.broadcast %cst_64 : f32 to vector<8x128xf32>
      %181 = arith.select %179, %169, %180 : vector<8x128xi1>, vector<8x128xf32>
      %cst_65 = arith.constant dense<0xFF800000> : vector<8xf32>
      %182 = vector.multi_reduction <maximumf>, %181, %cst_65 [1] : vector<8x128xf32> to vector<8xf32>
      %183 = vector.shape_cast %182 : vector<8xf32> to vector<8x1xf32>
      %184 = vector.broadcast %183 : vector<8x1xf32> to vector<8x128xf32>
      %185 = arith.subf %181, %184 : vector<8x128xf32>
      %186 = math.exp %185 : vector<8x128xf32>
      %cst_66 = arith.constant dense<0.000000e+00> : vector<8xf32>
      %187 = vector.multi_reduction <add>, %186, %cst_66 [1] : vector<8x128xf32> to vector<8xf32>
      %188 = vector.shape_cast %187 : vector<8xf32> to vector<8x1xf32>
      %189 = tpu.reciprocal %188 : vector<8x1xf32> -> vector<8x1xf32>
      %190 = vector.broadcast %189 : vector<8x1xf32> to vector<8x128xf32>
      %191 = arith.mulf %186, %190 : vector<8x128xf32>
      %192 = arith.truncf %191 : vector<8x128xf32> to vector<8x128xbf16>
      %c0_67 = arith.constant 0 : index
      %c0_68 = arith.constant 0 : index
      %193 = vector.load %arg10[%c0_67, %c0_68] : memref<8x128xbf16, #tpu.memory_space<vmem>>, vector<8x128xbf16>
      tpu.vector_store %arg10[%c0_67, %c0_68], %192 {strides = array<i32>} : memref<8x128xbf16, #tpu.memory_space<vmem>>, vector<8x128xbf16>,
      %c0_69 = arith.constant 0 : index
      %c0_70 = arith.constant 0 : index
      %194 = vector.load %arg6[%c0_69, %c0_70] : memref<8x8xf32, #tpu.memory_space<vmem>>, vector<8x8xf32>
      %cst_71 = arith.constant dense<0xFF800000> : vector<8xf32>
      %195 = vector.multi_reduction <maximumf>, %194, %cst_71 [1] : vector<8x8xf32> to vector<8xf32>
      %196 = vector.shape_cast %195 : vector<8xf32> to vector<8x1xf32>
      %197 = vector.broadcast %196 : vector<8x1xf32> to vector<8x8xf32>
      %198 = arith.subf %194, %197 : vector<8x8xf32>
      %199 = math.exp %198 : vector<8x8xf32>
      %cst_72 = arith.constant dense<0.000000e+00> : vector<8xf32>
      %200 = vector.multi_reduction <add>, %199, %cst_72 [1] : vector<8x8xf32> to vector<8xf32>
      %201 = vector.shape_cast %200 : vector<8xf32> to vector<8x1xf32>
      %202 = tpu.reciprocal %201 : vector<8x1xf32> -> vector<8x1xf32>
      %203 = vector.broadcast %202 : vector<8x1xf32> to vector<8x8xf32>
      %204 = arith.mulf %199, %203 : vector<8x8xf32>
      %c0_73 = arith.constant 0 : index
      %c0_74 = arith.constant 0 : index
      %205 = vector.load %arg11[%c0_73, %c0_74] : memref<8x8xf32, #tpu.memory_space<vmem>>, vector<8x8xf32>
      tpu.vector_store %arg11[%c0_73, %c0_74], %204 {strides = array<i32>} : memref<8x8xf32, #tpu.memory_space<vmem>>, vector<8x8xf32>,
    } else {
    }
    %c256_i32 = arith.constant 256 : i32
    %3 = arith.muli %arg1, %c256_i32 : i32
    %c0 = arith.constant 0 : index
    %c0_1 = arith.constant 0 : index
    %4 = vector.load %arg5[%c0, %c0_1] : memref<128x1xi32, #tpu.memory_space<vmem>>, vector<128x1xi32>
    %5 = tpu.iota {dimensions = array<i32: 1>} : vector<128x256xi32>
    %6 = vector.broadcast %3 : i32 to vector<128x256xi32>
    %7 = arith.addi %5, %6 : vector<128x256xi32>
    %8 = vector.broadcast %4 : vector<128x1xi32> to vector<128x256xi32>
    %9 = arith.cmpi eq, %8, %7 : vector<128x256xi32>
    %10 = arith.extui %9 : vector<128x256xi1> to vector<128x256xi32>
    %11 = arith.sitofp %10 : vector<128x256xi32> to vector<128x256xf32>
    %12 = arith.truncf %11 : vector<128x256xf32> to vector<128x256xbf16>
    %c0_2 = arith.constant 0 : index
    %c0_3 = arith.constant 0 : index
    %13 = vector.load %arg10[%c0_2, %c0_3] : memref<8x128xbf16, #tpu.memory_space<vmem>>, vector<8x128xbf16>
    %cst = arith.constant dense<0.000000e+00> : vector<8x256xf32>
    %14 = tpu.matmul %13, %12, %cst {dimension_numbers = #tpu.dot_dimension_numbers<[1], [0], [0], [1], [0, 0, 1, 1], [], []>} : vector<8x128xbf16>, vector<128x256xbf16>, vector<8x256xf32> -> vector<8x256xf32>
    %c0_4 = arith.constant 0 : index
    %c0_5 = arith.constant 0 : index
    %15 = vector.load %arg11[%c0_4, %c0_5] : memref<8x8xf32, #tpu.memory_space<vmem>>, vector<8x8xf32>
    %c0_6 = arith.constant 0 : index
    %c0_7 = arith.constant 0 : index
    %16 = vector.load %arg7[%c0_6, %c0_7] : memref<8x8xi32, #tpu.memory_space<vmem>>, vector<8x8xi32>
    %17 = tpu.iota {dimensions = array<i32: 1>} : vector<8x8xi32>
    %18 = tpu.iota {dimensions = array<i32: 1>} : vector<8x256xi32>
    %19 = vector.broadcast %3 : i32 to vector<8x256xi32>
    %20 = arith.addi %18, %19 : vector<8x256xi32>
    %cst_8 = arith.constant 0.000000e+00 : f32
    %21 = vector.broadcast %cst_8 : f32 to vector<8x256xf32>
    %c0_i32_9 = arith.constant 0 : i32
    %22 = vector.broadcast %c0_i32_9 : i32 to vector<8x8xi32>
    %23 = arith.cmpi eq, %17, %22 : vector<8x8xi32>
    %cst_10 = arith.constant 0.000000e+00 : f32
    %24 = vector.broadcast %cst_10 : f32 to vector<8x8xf32>
    %25 = arith.select %23, %15, %24 : vector<8x8xi1>, vector<8x8xf32>
    %cst_11 = arith.constant dense<0.000000e+00> : vector<8xf32>
    %26 = vector.multi_reduction <add>, %25, %cst_11 [1] : vector<8x8xf32> to vector<8xf32>
    %27 = vector.shape_cast %26 : vector<8xf32> to vector<8x1xf32>
    %c0_i32_12 = arith.constant 0 : i32
    %28 = vector.broadcast %c0_i32_12 : i32 to vector<8x8xi32>
    %29 = arith.select %23, %16, %28 : vector<8x8xi1>, vector<8x8xi32>
    %cst_13 = arith.constant dense<0> : vector<8xi32>
    %30 = vector.multi_reduction <add>, %29, %cst_13 [1] : vector<8x8xi32> to vector<8xi32>
    %31 = vector.shape_cast %30 : vector<8xi32> to vector<8x1xi32>
    %32 = vector.broadcast %31 : vector<8x1xi32> to vector<8x256xi32>
    %33 = arith.cmpi eq, %32, %20 : vector<8x256xi32>
    %cst_14 = arith.constant 0.000000e+00 : f32
    %34 = vector.shape_cast %27 : vector<8x1xf32> to vector<8x1xf32>
    %35 = vector.broadcast %34 : vector<8x1xf32> to vector<8x256xf32>
    %36 = vector.broadcast %cst_14 : f32 to vector<8x256xf32>
    %37 = arith.select %33, %35, %36 : vector<8x256xi1>, vector<8x256xf32>
    %38 = arith.addf %21, %37 : vector<8x256xf32>
    %c1_i32 = arith.constant 1 : i32
    %39 = vector.broadcast %c1_i32 : i32 to vector<8x8xi32>
    %40 = arith.cmpi eq, %17, %39 : vector<8x8xi32>
    %cst_15 = arith.constant 0.000000e+00 : f32
    %41 = vector.broadcast %cst_15 : f32 to vector<8x8xf32>
    %42 = arith.select %40, %15, %41 : vector<8x8xi1>, vector<8x8xf32>
    %cst_16 = arith.constant dense<0.000000e+00> : vector<8xf32>
    %43 = vector.multi_reduction <add>, %42, %cst_16 [1] : vector<8x8xf32> to vector<8xf32>
    %44 = vector.shape_cast %43 : vector<8xf32> to vector<8x1xf32>
    %c0_i32_17 = arith.constant 0 : i32
    %45 = vector.broadcast %c0_i32_17 : i32 to vector<8x8xi32>
    %46 = arith.select %40, %16, %45 : vector<8x8xi1>, vector<8x8xi32>
    %cst_18 = arith.constant dense<0> : vector<8xi32>
    %47 = vector.multi_reduction <add>, %46, %cst_18 [1] : vector<8x8xi32> to vector<8xi32>
    %48 = vector.shape_cast %47 : vector<8xi32> to vector<8x1xi32>
    %49 = vector.broadcast %48 : vector<8x1xi32> to vector<8x256xi32>
    %50 = arith.cmpi eq, %49, %20 : vector<8x256xi32>
    %cst_19 = arith.constant 0.000000e+00 : f32
    %51 = vector.shape_cast %44 : vector<8x1xf32> to vector<8x1xf32>
    %52 = vector.broadcast %51 : vector<8x1xf32> to vector<8x256xf32>
    %53 = vector.broadcast %cst_19 : f32 to vector<8x256xf32>
    %54 = arith.select %50, %52, %53 : vector<8x256xi1>, vector<8x256xf32>
    %55 = arith.addf %38, %54 : vector<8x256xf32>
    %c2_i32 = arith.constant 2 : i32
    %56 = vector.broadcast %c2_i32 : i32 to vector<8x8xi32>
    %57 = arith.cmpi eq, %17, %56 : vector<8x8xi32>
    %cst_20 = arith.constant 0.000000e+00 : f32
    %58 = vector.broadcast %cst_20 : f32 to vector<8x8xf32>
    %59 = arith.select %57, %15, %58 : vector<8x8xi1>, vector<8x8xf32>
    %cst_21 = arith.constant dense<0.000000e+00> : vector<8xf32>
    %60 = vector.multi_reduction <add>, %59, %cst_21 [1] : vector<8x8xf32> to vector<8xf32>
    %61 = vector.shape_cast %60 : vector<8xf32> to vector<8x1xf32>
    %c0_i32_22 = arith.constant 0 : i32
    %62 = vector.broadcast %c0_i32_22 : i32 to vector<8x8xi32>
    %63 = arith.select %57, %16, %62 : vector<8x8xi1>, vector<8x8xi32>
    %cst_23 = arith.constant dense<0> : vector<8xi32>
    %64 = vector.multi_reduction <add>, %63, %cst_23 [1] : vector<8x8xi32> to vector<8xi32>
    %65 = vector.shape_cast %64 : vector<8xi32> to vector<8x1xi32>
    %66 = vector.broadcast %65 : vector<8x1xi32> to vector<8x256xi32>
    %67 = arith.cmpi eq, %66, %20 : vector<8x256xi32>
    %cst_24 = arith.constant 0.000000e+00 : f32
    %68 = vector.shape_cast %61 : vector<8x1xf32> to vector<8x1xf32>
    %69 = vector.broadcast %68 : vector<8x1xf32> to vector<8x256xf32>
    %70 = vector.broadcast %cst_24 : f32 to vector<8x256xf32>
    %71 = arith.select %67, %69, %70 : vector<8x256xi1>, vector<8x256xf32>
    %72 = arith.addf %55, %71 : vector<8x256xf32>
    %c3_i32 = arith.constant 3 : i32
    %73 = vector.broadcast %c3_i32 : i32 to vector<8x8xi32>
    %74 = arith.cmpi eq, %17, %73 : vector<8x8xi32>
    %cst_25 = arith.constant 0.000000e+00 : f32
    %75 = vector.broadcast %cst_25 : f32 to vector<8x8xf32>
    %76 = arith.select %74, %15, %75 : vector<8x8xi1>, vector<8x8xf32>
    %cst_26 = arith.constant dense<0.000000e+00> : vector<8xf32>
    %77 = vector.multi_reduction <add>, %76, %cst_26 [1] : vector<8x8xf32> to vector<8xf32>
    %78 = vector.shape_cast %77 : vector<8xf32> to vector<8x1xf32>
    %c0_i32_27 = arith.constant 0 : i32
    %79 = vector.broadcast %c0_i32_27 : i32 to vector<8x8xi32>
    %80 = arith.select %74, %16, %79 : vector<8x8xi1>, vector<8x8xi32>
    %cst_28 = arith.constant dense<0> : vector<8xi32>
    %81 = vector.multi_reduction <add>, %80, %cst_28 [1] : vector<8x8xi32> to vector<8xi32>
    %82 = vector.shape_cast %81 : vector<8xi32> to vector<8x1xi32>
    %83 = vector.broadcast %82 : vector<8x1xi32> to vector<8x256xi32>
    %84 = arith.cmpi eq, %83, %20 : vector<8x256xi32>
    %cst_29 = arith.constant 0.000000e+00 : f32
    %85 = vector.shape_cast %78 : vector<8x1xf32> to vector<8x1xf32>
    %86 = vector.broadcast %85 : vector<8x1xf32> to vector<8x256xf32>
    %87 = vector.broadcast %cst_29 : f32 to vector<8x256xf32>
    %88 = arith.select %84, %86, %87 : vector<8x256xi1>, vector<8x256xf32>
    %89 = arith.addf %72, %88 : vector<8x256xf32>
    %c4_i32 = arith.constant 4 : i32
    %90 = vector.broadcast %c4_i32 : i32 to vector<8x8xi32>
    %91 = arith.cmpi eq, %17, %90 : vector<8x8xi32>
    %cst_30 = arith.constant 0.000000e+00 : f32
    %92 = vector.broadcast %cst_30 : f32 to vector<8x8xf32>
    %93 = arith.select %91, %15, %92 : vector<8x8xi1>, vector<8x8xf32>
    %cst_31 = arith.constant dense<0.000000e+00> : vector<8xf32>
    %94 = vector.multi_reduction <add>, %93, %cst_31 [1] : vector<8x8xf32> to vector<8xf32>
    %95 = vector.shape_cast %94 : vector<8xf32> to vector<8x1xf32>
    %c0_i32_32 = arith.constant 0 : i32
    %96 = vector.broadcast %c0_i32_32 : i32 to vector<8x8xi32>
    %97 = arith.select %91, %16, %96 : vector<8x8xi1>, vector<8x8xi32>
    %cst_33 = arith.constant dense<0> : vector<8xi32>
    %98 = vector.multi_reduction <add>, %97, %cst_33 [1] : vector<8x8xi32> to vector<8xi32>
    %99 = vector.shape_cast %98 : vector<8xi32> to vector<8x1xi32>
    %100 = vector.broadcast %99 : vector<8x1xi32> to vector<8x256xi32>
    %101 = arith.cmpi eq, %100, %20 : vector<8x256xi32>
    %cst_34 = arith.constant 0.000000e+00 : f32
    %102 = vector.shape_cast %95 : vector<8x1xf32> to vector<8x1xf32>
    %103 = vector.broadcast %102 : vector<8x1xf32> to vector<8x256xf32>
    %104 = vector.broadcast %cst_34 : f32 to vector<8x256xf32>
    %105 = arith.select %101, %103, %104 : vector<8x256xi1>, vector<8x256xf32>
    %106 = arith.addf %89, %105 : vector<8x256xf32>
    %c5_i32 = arith.constant 5 : i32
    %107 = vector.broadcast %c5_i32 : i32 to vector<8x8xi32>
    %108 = arith.cmpi eq, %17, %107 : vector<8x8xi32>
    %cst_35 = arith.constant 0.000000e+00 : f32
    %109 = vector.broadcast %cst_35 : f32 to vector<8x8xf32>
    %110 = arith.select %108, %15, %109 : vector<8x8xi1>, vector<8x8xf32>
    %cst_36 = arith.constant dense<0.000000e+00> : vector<8xf32>
    %111 = vector.multi_reduction <add>, %110, %cst_36 [1] : vector<8x8xf32> to vector<8xf32>
    %112 = vector.shape_cast %111 : vector<8xf32> to vector<8x1xf32>
    %c0_i32_37 = arith.constant 0 : i32
    %113 = vector.broadcast %c0_i32_37 : i32 to vector<8x8xi32>
    %114 = arith.select %108, %16, %113 : vector<8x8xi1>, vector<8x8xi32>
    %cst_38 = arith.constant dense<0> : vector<8xi32>
    %115 = vector.multi_reduction <add>, %114, %cst_38 [1] : vector<8x8xi32> to vector<8xi32>
    %116 = vector.shape_cast %115 : vector<8xi32> to vector<8x1xi32>
    %117 = vector.broadcast %116 : vector<8x1xi32> to vector<8x256xi32>
    %118 = arith.cmpi eq, %117, %20 : vector<8x256xi32>
    %cst_39 = arith.constant 0.000000e+00 : f32
    %119 = vector.shape_cast %112 : vector<8x1xf32> to vector<8x1xf32>
    %120 = vector.broadcast %119 : vector<8x1xf32> to vector<8x256xf32>
    %121 = vector.broadcast %cst_39 : f32 to vector<8x256xf32>
    %122 = arith.select %118, %120, %121 : vector<8x256xi1>, vector<8x256xf32>
    %123 = arith.addf %106, %122 : vector<8x256xf32>
    %c6_i32 = arith.constant 6 : i32
    %124 = vector.broadcast %c6_i32 : i32 to vector<8x8xi32>
    %125 = arith.cmpi eq, %17, %124 : vector<8x8xi32>
    %cst_40 = arith.constant 0.000000e+00 : f32
    %126 = vector.broadcast %cst_40 : f32 to vector<8x8xf32>
    %127 = arith.select %125, %15, %126 : vector<8x8xi1>, vector<8x8xf32>
    %cst_41 = arith.constant dense<0.000000e+00> : vector<8xf32>
    %128 = vector.multi_reduction <add>, %127, %cst_41 [1] : vector<8x8xf32> to vector<8xf32>
    %129 = vector.shape_cast %128 : vector<8xf32> to vector<8x1xf32>
    %c0_i32_42 = arith.constant 0 : i32
    %130 = vector.broadcast %c0_i32_42 : i32 to vector<8x8xi32>
    %131 = arith.select %125, %16, %130 : vector<8x8xi1>, vector<8x8xi32>
    %cst_43 = arith.constant dense<0> : vector<8xi32>
    %132 = vector.multi_reduction <add>, %131, %cst_43 [1] : vector<8x8xi32> to vector<8xi32>
    %133 = vector.shape_cast %132 : vector<8xi32> to vector<8x1xi32>
    %134 = vector.broadcast %133 : vector<8x1xi32> to vector<8x256xi32>
    %135 = arith.cmpi eq, %134, %20 : vector<8x256xi32>
    %cst_44 = arith.constant 0.000000e+00 : f32
    %136 = vector.shape_cast %129 : vector<8x1xf32> to vector<8x1xf32>
    %137 = vector.broadcast %136 : vector<8x1xf32> to vector<8x256xf32>
    %138 = vector.broadcast %cst_44 : f32 to vector<8x256xf32>
    %139 = arith.select %135, %137, %138 : vector<8x256xi1>, vector<8x256xf32>
    %140 = arith.addf %123, %139 : vector<8x256xf32>
    %c7_i32 = arith.constant 7 : i32
    %141 = vector.broadcast %c7_i32 : i32 to vector<8x8xi32>
    %142 = arith.cmpi eq, %17, %141 : vector<8x8xi32>
    %cst_45 = arith.constant 0.000000e+00 : f32
    %143 = vector.broadcast %cst_45 : f32 to vector<8x8xf32>
    %144 = arith.select %142, %15, %143 : vector<8x8xi1>, vector<8x8xf32>
    %cst_46 = arith.constant dense<0.000000e+00> : vector<8xf32>
    %145 = vector.multi_reduction <add>, %144, %cst_46 [1] : vector<8x8xf32> to vector<8xf32>
    %146 = vector.shape_cast %145 : vector<8xf32> to vector<8x1xf32>
    %c0_i32_47 = arith.constant 0 : i32
    %147 = vector.broadcast %c0_i32_47 : i32 to vector<8x8xi32>
    %148 = arith.select %142, %16, %147 : vector<8x8xi1>, vector<8x8xi32>
    %cst_48 = arith.constant dense<0> : vector<8xi32>
    %149 = vector.multi_reduction <add>, %148, %cst_48 [1] : vector<8x8xi32> to vector<8xi32>
    %150 = vector.shape_cast %149 : vector<8xi32> to vector<8x1xi32>
    %151 = vector.broadcast %150 : vector<8x1xi32> to vector<8x256xi32>
    %152 = arith.cmpi eq, %151, %20 : vector<8x256xi32>
    %cst_49 = arith.constant 0.000000e+00 : f32
    %153 = vector.shape_cast %146 : vector<8x1xf32> to vector<8x1xf32>
    %154 = vector.broadcast %153 : vector<8x1xf32> to vector<8x256xf32>
    %155 = vector.broadcast %cst_49 : f32 to vector<8x256xf32>
    %156 = arith.select %152, %154, %155 : vector<8x256xi1>, vector<8x256xf32>
    %157 = arith.addf %140, %156 : vector<8x256xf32>
    %c8_i32 = arith.constant 8 : i32
    %c0_50 = arith.constant 0 : index
    %c0_51 = arith.constant 0 : index
    %158 = vector.load %arg9[%c0_50, %c0_51] : memref<8x1xf32, #tpu.memory_space<vmem>>, vector<8x1xf32>
    %159 = arith.subf %14, %157 : vector<8x256xf32>
    %160 = vector.broadcast %158 : vector<8x1xf32> to vector<8x256xf32>
    %161 = arith.mulf %160, %159 : vector<8x256xf32>
    %162 = arith.addf %157, %161 : vector<8x256xf32>
    %c0_52 = arith.constant 0 : index
    %c0_53 = arith.constant 0 : index
    %163 = vector.load %arg8[%c0_52, %c0_53] : memref<8x256xf32, #tpu.memory_space<vmem>>, vector<8x256xf32>
    tpu.vector_store %arg8[%c0_52, %c0_53], %162 {strides = array<i32>} : memref<8x256xf32, #tpu.memory_space<vmem>>, vector<8x256xf32>,
    return
  }
  func.func @transform_0(%arg0: i32, %arg1: i32) -> (i32, i32) {
    %c0_i32 = arith.constant 0 : i32
    %c0_i32_0 = arith.constant 0 : i32
    return %arg0, %c0_i32 : i32, i32
  }
  func.func @transform_1(%arg0: i32, %arg1: i32) -> (i32, i32) {
    %c0_i32 = arith.constant 0 : i32
    %c0_i32_0 = arith.constant 0 : i32
    %c0_i32_1 = arith.constant 0 : i32
    return %c0_i32, %c0_i32_0 : i32, i32
  }
  func.func @transform_2(%arg0: i32, %arg1: i32) -> (i32, i32) {
    %c0_i32 = arith.constant 0 : i32
    %c0_i32_0 = arith.constant 0 : i32
    %c0_i32_1 = arith.constant 0 : i32
    return %c0_i32, %c0_i32_0 : i32, i32
  }
  func.func @transform_3(%arg0: i32, %arg1: i32) -> (i32, i32) {
    %c0_i32 = arith.constant 0 : i32
    %c0_i32_0 = arith.constant 0 : i32
    %c0_i32_1 = arith.constant 0 : i32
    return %c0_i32, %c0_i32_0 : i32, i32
  }
  func.func @transform_4(%arg0: i32, %arg1: i32) -> (i32, i32) {
    %c0_i32 = arith.constant 0 : i32
    %c0_i32_0 = arith.constant 0 : i32
    return %arg0, %c0_i32 : i32, i32
  }
  func.func @transform_5(%arg0: i32, %arg1: i32) -> (i32, i32) {
    %c0_i32 = arith.constant 0 : i32
    %c0_i32_0 = arith.constant 0 : i32
    return %arg0, %c0_i32 : i32, i32
  }
  func.func @transform_6(%arg0: i32, %arg1: i32) -> (i32, i32) {
    %c0_i32 = arith.constant 0 : i32
    return %arg0, %arg1 : i32, i32
  }
}

</mosaic_0001>

<llo_original>
// kernel: tpu_custom_call.1
$region0: #{tpu_custom_call.1}
  #allocation0 [shape = 'u32[]', space=smem, size = 0x4, offset = 0x4, fixed_abs, tag = 'smem constant byte address 0x4 - core index']
  #allocation1 [shape = 'u32[72,128]{1,0:T(1,128)}', space=vmem, size = 0x9000, scoped, tag = 'internal scratch']
  #allocation2 [shape = 'f32[8,1]{1,0:T(8,128)}', space=vmem, size = 0x1000, scoped, tag = 'scratch operand']
  #allocation3 [shape = 'bf16[8,128]{1,0:T(8,128)(2,1)}', space=vmem, size = 0x800, scoped, tag = 'scratch operand']
  #allocation4 [shape = 'f32[8,8]{1,0:T(8,128)}', space=vmem, size = 0x1000, scoped, tag = 'scratch operand']
  %s0 = inlined_call_operand.vmem [shape: bf16[8,32], index: 0, kind: input, shape index: {}]
  %s1 = inlined_call_operand.vmem [shape: bf16[32,128], index: 1, kind: input, shape index: {}]
  %s2 = inlined_call_operand.vmem [shape: f32[1,128], index: 2, kind: input, shape index: {}]
  %s3 = inlined_call_operand.vmem [shape: s32[128,1], index: 3, kind: input, shape index: {}]
  %s4 = inlined_call_operand.vmem [shape: f32[8,8], index: 4, kind: input, shape index: {}]
  %s5 = inlined_call_operand.vmem [shape: s32[8,8], index: 5, kind: input, shape index: {}]
  %s6 = inlined_call_operand.hbm [shape: f32[8,256], index: 6, kind: output, shape index: {}]
  %s7 = sld [smem:[#allocation0]]
  $region38: #{tpu_custom_call.1} parent=0
    _
  %s9 = ssub.s32 1, %s7
  %s10 = scalar_select 0, %s9, %s7
  $region1: #{tpu_custom_call.1} parent=0
    #allocation5 [shape = 'u8[8192]{0}', space=vmem, size = 0x2000, scoped, tag = 'output window, operand 0, single buffered']
    #allocation6 [shape = 's32[1]{0}', space=sflag, size = 0x4, scoped, tag = 'scoped memory for tpu_custom_call.1']
    %11 = vsyncpa [#allocation6], 0
    // Predicated region
    $region2: #{tpu_custom_call.1} parent=1 // pred_check
      _
    $region3: #{tpu_custom_call.1} parent=1 // pred_check_branch
      %13 = sbr.rel (0) target = $region5
    $region4: #{tpu_custom_call.1} parent=1 // pred_region
      _
    $region5: #{tpu_custom_call.1} parent=1 // pred_fallthru
      _
    // Predicated region
    $region6: #{tpu_custom_call.1} parent=1 // pred_check
      _
    $region7: #{tpu_custom_call.1} parent=1 // pred_check_branch
      %15 = sbr.rel (0) target = $region9
    $region8: #{tpu_custom_call.1} parent=1 // pred_region
      _
    $region9: #{tpu_custom_call.1} parent=1 // pred_fallthru
      _
    // Predicated region
    $region10: #{tpu_custom_call.1} parent=1 // pred_check
      _
    $region11: #{tpu_custom_call.1} parent=1 // pred_check_branch
      %17 = sbr.rel (0) target = $region13
    $region12: #{tpu_custom_call.1} parent=1 // pred_region
      _
    $region13: #{tpu_custom_call.1} parent=1 // pred_fallthru
      _
    // Predicated region
    $region14: #{tpu_custom_call.1} parent=1 // pred_check
      _
    $region15: #{tpu_custom_call.1} parent=1 // pred_check_branch
      %19 = sbr.rel (0) target = $region17
    $region16: #{tpu_custom_call.1} parent=1 // pred_region
      _
    $region17: #{tpu_custom_call.1} parent=1 // pred_fallthru
      _
    // Predicated region
    $region18: #{tpu_custom_call.1} parent=1 // pred_check
      _
    $region19: #{tpu_custom_call.1} parent=1 // pred_check_branch
      %21 = sbr.rel (0) target = $region21
    $region20: #{tpu_custom_call.1} parent=1 // pred_region
      _
    $region21: #{tpu_custom_call.1} parent=1 // pred_fallthru
      _
    // Predicated region
    $region22: #{tpu_custom_call.1} parent=1 // pred_check
      _
    $region23: #{tpu_custom_call.1} parent=1 // pred_check_branch
      %23 = sbr.rel (0) target = $region25
    $region24: #{tpu_custom_call.1} parent=1 // pred_region
      _
    $region25: #{tpu_custom_call.1} parent=1 // pred_fallthru
      _
    %p25 = scmp.eq.s32.totalorder 0, 0
    // Predicated region
    $region26: #{tpu_custom_call.1} parent=1 // pred_check
      %p26 = pneg %p25
    $region27: #{tpu_custom_call.1} parent=1 // pred_check_branch
      %28 = sbr.rel (%p26) target = $region29
    $region28: #{tpu_custom_call.1} parent=1 // pred_region
      %v29 = vld [vmem:[%s0] sm:$0xf]
      %v30 = vld [vmem:[%s1] sm:$0xf]
      %v31 = vld [vmem:[%s1 + $0x4] sm:$0xf]
      %v32 = vld [vmem:[%s1 + $0x8] sm:$0xf]
      %v33 = vld [vmem:[%s1 + $0xc] sm:$0xf]
      %v34 = vld [vmem:[%s2] sm:$0x1]
      %v36 = vperm.slane %v34, 0
      %v42 = vunpack.c.l.b16 %v30
      %v43 = vunpack.c.l.b16 %v31
      %v44 = vunpack.c.l.b16 %v32
      %v45 = vunpack.c.l.b16 %v33
      %v46 = vpack.c.b16 %v43, %v42
      %v47 = vpack.c.b16 %v45, %v44
      %vm50 = vcmask 261120
      %v52 = vsel %vm50, %v29, 0
      %54 = vmatpush.bf16.msra.mxu0 0
      %55 = vmatpush.bf16.msra.mxu0 0
      %56 = vmatpush.bf16.msra.mxu0 0
      %57 = vmatpush.bf16.msra.mxu0 0
      %58 = vmatpush.bf16.msra.mxu0 0
      %59 = vmatpush.bf16.msra.mxu0 0
      %60 = vmatpush.bf16.msra.mxu0 %v47
      %61 = vmatpush.bf16.msra.mxu0 %v46
      %62 = vmatmul.bf16.gmra.mxu0 %v52
      %v63 = vpop.f32.mrf.mxu0
      %v64 = vadd.f32 %v36, %v63
      %v65 = vpop.f32.mrf.mxu0
      %66 = vdwg.mxu0
      %v67 = vxor.u32 %v64, 2147483648
      %v68 = vmul.f32 %v67, 1.442695
      %v69 = vpow.pop %v68
      %v70 = vadd.f32 %v69, 1.0
      %v71 = vrcp.pop %v70
      %v72 = vmul.f32 %v70, %v71
      %v73 = vsub.f32 1.0, %v72
      %v74 = vmul.f32 %v71, %v73
      %v75 = vadd.f32 %v71, %v74
      %vm76 = vweird.f32 %v70
      %vm77 = vweird.f32 %v71
      %vm78 = vmor %vm76, %vm77
      %v79 = vsel %vm78, %v71, %v75
      %v80 = vand.u32 2147483647, %v70
      %vm81 = vcmp.eq.f32.partialorder %v80, 8.507059e+37
      %v82 = vand.u32 %v70, 2147483648
      %v83 = vor.u32 1.1754944e-38, %v82
      %v84 = vsel %vm81, %v83, %v79
      %v85 = vmul.f32 1.0, %v84
      %87 = vrot.lane.b32.xlu0 %v85, 64
      %v88 = vpop.permute.xlu0 %87
      %vm90 = vcmask 7168
      %91 = vst.msk [vmem:[#allocation2] sm:$0xff] %vm90, %v88
      %v92 = vlaneseq
      %v93 = vand.u32 %v92, 127
      %vm94 = vcmp.lt.s32.totalorder %v93, 64
      %v95 = vsel %vm94, %v64, -1e+30
      %96 = vmax.xlane.f32.xlu0 %v95
      %v97 = vpop.xlane.xlu0 %96
      %v98 = vsub.f32 %v95, %v97
      %v99 = vmul.f32 %v98, 1.442695
      %v100 = vpow.pop %v99
      %101 = vadd.xlane.f32.xlu0 %v100
      %v102 = vpop.xlane.xlu0 %101
      %v103 = vrcp.pop %v102
      %v104 = vmul.f32 %v102, %v103
      %v105 = vsub.f32 1.0, %v104
      %v106 = vmul.f32 %v103, %v105
      %v107 = vadd.f32 %v103, %v106
      %vm108 = vweird.f32 %v102
      %vm109 = vweird.f32 %v103
      %vm110 = vmor %vm108, %vm109
      %v111 = vsel %vm110, %v103, %v107
      %v112 = vand.u32 2147483647, %v102
      %vm113 = vcmp.eq.f32.partialorder %v112, 8.507059e+37
      %v114 = vand.u32 %v102, 2147483648
      %v115 = vor.u32 1.1754944e-38, %v114
      %v116 = vsel %vm113, %v115, %v111
      %v117 = vmul.f32 %v100, %v116
      %v118 = vpack.c.bf16 %v117, %v117
      %119 = vst [vmem:[#allocation3] sm:$0xf] %v118
      %v120 = vld [vmem:[%s4] sm:$0xff]
      %vm121 = vcmask 64512
      %v122 = vsel %vm121, %v120, -inf
      %123 = vmax.xlane.f32.xlu0 %v122
      %v124 = vpop.xlane.xlu0 %123
      %v125 = vsub.f32 %v120, %v124
      %v126 = vmul.f32 %v125, 1.442695
      %v127 = vpow.pop %v126
      %v128 = vsel %vm121, %v127, 0.0
      %129 = vadd.xlane.f32.xlu0 %v128
      %v130 = vpop.xlane.xlu0 %129
      %v131 = vrcp.pop %v130
      %v132 = vmul.f32 %v130, %v131
      %v133 = vsub.f32 1.0, %v132
      %v134 = vmul.f32 %v131, %v133
      %v135 = vadd.f32 %v131, %v134
      %vm136 = vweird.f32 %v130
      %vm137 = vweird.f32 %v131
      %vm138 = vmor %vm136, %vm137
      %v139 = vsel %vm138, %v131, %v135
      %v140 = vand.u32 2147483647, %v130
      %vm141 = vcmp.eq.f32.partialorder %v140, 8.507059e+37
      %v142 = vand.u32 %v130, 2147483648
      %v143 = vor.u32 1.1754944e-38, %v142
      %v144 = vsel %vm141, %v143, %v139
      %v145 = vmul.f32 %v127, %v144
      %146 = vst.msk [vmem:[#allocation4] sm:$0xff] %vm121, %v145
    $region29: #{tpu_custom_call.1} parent=1 // pred_fallthru
      _
    %s147 = smul.u32 0, 256
    %v148 = vld [vmem:[%s3] sm:$0xff]
    %v149 = vld [vmem:[%s3 + $0x8] sm:$0xff]
    %v150 = vld [vmem:[%s3 + $0x10] sm:$0xff]
    %v151 = vld [vmem:[%s3 + $0x18] sm:$0xff]
    %v152 = vld [vmem:[%s3 + $0x20] sm:$0xff]
    %v153 = vld [vmem:[%s3 + $0x28] sm:$0xff]
    %v154 = vld [vmem:[%s3 + $0x30] sm:$0xff]
    %v155 = vld [vmem:[%s3 + $0x38] sm:$0xff]
    %v156 = vld [vmem:[%s3 + $0x40] sm:$0xff]
    %v157 = vld [vmem:[%s3 + $0x48] sm:$0xff]
    %v158 = vld [vmem:[%s3 + $0x50] sm:$0xff]
    %v159 = vld [vmem:[%s3 + $0x58] sm:$0xff]
    %v160 = vld [vmem:[%s3 + $0x60] sm:$0xff]
    %v161 = vld [vmem:[%s3 + $0x68] sm:$0xff]
    %v162 = vld [vmem:[%s3 + $0x70] sm:$0xff]
    %v163 = vld [vmem:[%s3 + $0x78] sm:$0xff]
    %v164 = vlaneseq
    %v165 = vand.u32 %v164, 127
    %v166 = vadd.s32 %v165, 128
    %v167 = vstv %s147
    %v168 = vadd.s32 %v165, %v167
    %v169 = vadd.s32 %v166, %v167
    %170 = vset.pattern.permute.xlu0 0
    %171 = vperm.xlu0 %170, %v148
    %v172 = vpop.permute.xlu0 %171
    %173 = vset.pattern.permute.xlu0 0
    %174 = vperm.xlu0 %173, %v149
    %v175 = vpop.permute.xlu0 %174
    %176 = vset.pattern.permute.xlu0 0
    %177 = vperm.xlu0 %176, %v150
    %v178 = vpop.permute.xlu0 %177
    %179 = vset.pattern.permute.xlu0 0
    %180 = vperm.xlu0 %179, %v151
    %v181 = vpop.permute.xlu0 %180
    %182 = vset.pattern.permute.xlu0 0
    %183 = vperm.xlu0 %182, %v152
    %v184 = vpop.permute.xlu0 %183
    %185 = vset.pattern.permute.xlu0 0
    %186 = vperm.xlu0 %185, %v153
    %v187 = vpop.permute.xlu0 %186
    %188 = vset.pattern.permute.xlu0 0
    %189 = vperm.xlu0 %188, %v154
    %v190 = vpop.permute.xlu0 %189
    %191 = vset.pattern.permute.xlu0 0
    %192 = vperm.xlu0 %191, %v155
    %v193 = vpop.permute.xlu0 %192
    %194 = vset.pattern.permute.xlu0 0
    %195 = vperm.xlu0 %194, %v156
    %v196 = vpop.permute.xlu0 %195
    %197 = vset.pattern.permute.xlu0 0
    %198 = vperm.xlu0 %197, %v157
    %v199 = vpop.permute.xlu0 %198
    %200 = vset.pattern.permute.xlu0 0
    %201 = vperm.xlu0 %200, %v158
    %v202 = vpop.permute.xlu0 %201
    %203 = vset.pattern.permute.xlu0 0
    %204 = vperm.xlu0 %203, %v159
    %v205 = vpop.permute.xlu0 %204
    %206 = vset.pattern.permute.xlu0 0
    %207 = vperm.xlu0 %206, %v160
    %v208 = vpop.permute.xlu0 %207
    %209 = vset.pattern.permute.xlu0 0
    %210 = vperm.xlu0 %209, %v161
    %v211 = vpop.permute.xlu0 %210
    %212 = vset.pattern.permute.xlu0 0
    %213 = vperm.xlu0 %212, %v162
    %v214 = vpop.permute.xlu0 %213
    %215 = vset.pattern.permute.xlu0 0
    %216 = vperm.xlu0 %215, %v163
    %v217 = vpop.permute.xlu0 %216
    %vm218 = vcmp.eq.s32.totalorder %v172, %v168
    %vm219 = vcmp.eq.s32.totalorder %v172, %v169
    %vm220 = vcmp.eq.s32.totalorder %v175, %v168
    %vm221 = vcmp.eq.s32.totalorder %v175, %v169
    %vm222 = vcmp.eq.s32.totalorder %v178, %v168
    %vm223 = vcmp.eq.s32.totalorder %v178, %v169
    %vm224 = vcmp.eq.s32.totalorder %v181, %v168
    %vm225 = vcmp.eq.s32.totalorder %v181, %v169
    %vm226 = vcmp.eq.s32.totalorder %v184, %v168
    %vm227 = vcmp.eq.s32.totalorder %v184, %v169
    %vm228 = vcmp.eq.s32.totalorder %v187, %v168
    %vm229 = vcmp.eq.s32.totalorder %v187, %v169
    %vm230 = vcmp.eq.s32.totalorder %v190, %v168
    %vm231 = vcmp.eq.s32.totalorder %v190, %v169
    %vm232 = vcmp.eq.s32.totalorder %v193, %v168
    %vm233 = vcmp.eq.s32.totalorder %v193, %v169
    %vm234 = vcmp.eq.s32.totalorder %v196, %v168
    %vm235 = vcmp.eq.s32.totalorder %v196, %v169
    %vm236 = vcmp.eq.s32.totalorder %v199, %v168
    %vm237 = vcmp.eq.s32.totalorder %v199, %v169
    %vm238 = vcmp.eq.s32.totalorder %v202, %v168
    %vm239 = vcmp.eq.s32.totalorder %v202, %v169
    %vm240 = vcmp.eq.s32.totalorder %v205, %v168
    %vm241 = vcmp.eq.s32.totalorder %v205, %v169
    %vm242 = vcmp.eq.s32.totalorder %v208, %v168
    %vm243 = vcmp.eq.s32.totalorder %v208, %v169
    %vm244 = vcmp.eq.s32.totalorder %v211, %v168
    %vm245 = vcmp.eq.s32.totalorder %v211, %v169
    %vm246 = vcmp.eq.s32.totalorder %v214, %v168
    %vm247 = vcmp.eq.s32.totalorder %v214, %v169
    %vm248 = vcmp.eq.s32.totalorder %v217, %v168
    %vm249 = vcmp.eq.s32.totalorder %v217, %v169
    %v250 = vsel %vm218, 1, 0
    %v251 = vsel %vm219, 1, 0
    %v252 = vsel %vm220, 1, 0
    %v253 = vsel %vm221, 1, 0
    %v254 = vsel %vm222, 1, 0
    %v255 = vsel %vm223, 1, 0
    %v256 = vsel %vm224, 1, 0
    %v257 = vsel %vm225, 1, 0
    %v258 = vsel %vm226, 1, 0
    %v259 = vsel %vm227, 1, 0
    %v260 = vsel %vm228, 1, 0
    %v261 = vsel %vm229, 1, 0
    %v262 = vsel %vm230, 1, 0
    %v263 = vsel %vm231, 1, 0
    %v264 = vsel %vm232, 1, 0
    %v265 = vsel %vm233, 1, 0
    %v266 = vsel %vm234, 1, 0
    %v267 = vsel %vm235, 1, 0
    %v268 = vsel %vm236, 1, 0
    %v269 = vsel %vm237, 1, 0
    %v270 = vsel %vm238, 1, 0
    %v271 = vsel %vm239, 1, 0
    %v272 = vsel %vm240, 1, 0
    %v273 = vsel %vm241, 1, 0
    %v274 = vsel %vm242, 1, 0
    %v275 = vsel %vm243, 1, 0
    %v276 = vsel %vm244, 1, 0
    %v277 = vsel %vm245, 1, 0
    %v278 = vsel %vm246, 1, 0
    %v279 = vsel %vm247, 1, 0
    %v280 = vsel %vm248, 1, 0
    %v281 = vsel %vm249, 1, 0
    %v282 = vcvt.s32.f32 %v250
    %v283 = vcvt.s32.f32 %v251
    %v284 = vcvt.s32.f32 %v252
    %v285 = vcvt.s32.f32 %v253
    %v286 = vcvt.s32.f32 %v254
    %v287 = vcvt.s32.f32 %v255
    %v288 = vcvt.s32.f32 %v256
    %v289 = vcvt.s32.f32 %v257
    %v290 = vcvt.s32.f32 %v258
    %v291 = vcvt.s32.f32 %v259
    %v292 = vcvt.s32.f32 %v260
    %v293 = vcvt.s32.f32 %v261
    %v294 = vcvt.s32.f32 %v262
    %v295 = vcvt.s32.f32 %v263
    %v296 = vcvt.s32.f32 %v264
    %v297 = vcvt.s32.f32 %v265
    %v298 = vcvt.s32.f32 %v266
    %v299 = vcvt.s32.f32 %v267
    %v300 = vcvt.s32.f32 %v268
    %v301 = vcvt.s32.f32 %v269
    %v302 = vcvt.s32.f32 %v270
    %v303 = vcvt.s32.f32 %v271
    %v304 = vcvt.s32.f32 %v272
    %v305 = vcvt.s32.f32 %v273
    %v306 = vcvt.s32.f32 %v274
    %v307 = vcvt.s32.f32 %v275
    %v308 = vcvt.s32.f32 %v276
    %v309 = vcvt.s32.f32 %v277
    %v310 = vcvt.s32.f32 %v278
    %v311 = vcvt.s32.f32 %v279
    %v312 = vcvt.s32.f32 %v280
    %v313 = vcvt.s32.f32 %v281
    %v314 = vpack.c.bf16 %v284, %v282
    %v315 = vpack.c.bf16 %v285, %v283
    %v316 = vpack.c.bf16 %v288, %v286
    %v317 = vpack.c.bf16 %v289, %v287
    %v318 = vpack.c.bf16 %v292, %v290
    %v319 = vpack.c.bf16 %v293, %v291
    %v320 = vpack.c.bf16 %v296, %v294
    %v321 = vpack.c.bf16 %v297, %v295
    %v322 = vpack.c.bf16 %v300, %v298
    %v323 = vpack.c.bf16 %v301, %v299
    %v324 = vpack.c.bf16 %v304, %v302
    %v325 = vpack.c.bf16 %v305, %v303
    %v326 = vpack.c.bf16 %v308, %v306
    %v327 = vpack.c.bf16 %v309, %v307
    %v328 = vpack.c.bf16 %v312, %v310
    %v329 = vpack.c.bf16 %v313, %v311
    %v330 = vld [vmem:[#allocation3] sm:$0xf]
    %331 = vmatpush.bf16.msra.mxu0 %v328
    %332 = vmatpush.bf16.msra.mxu0 %v326
    %333 = vmatpush.bf16.msra.mxu0 %v324
    %334 = vmatpush.bf16.msra.mxu0 %v322
    %335 = vmatpush.bf16.msra.mxu0 %v320
    %336 = vmatpush.bf16.msra.mxu0 %v318
    %337 = vmatpush.bf16.msra.mxu0 %v316
    %338 = vmatpush.bf16.msra.mxu0 %v314
    %339 = vmatmul.bf16.gmra.mxu0 %v330
    %v340 = vpop.f32.mrf.mxu0
    %v341 = vadd.f32 0.0, %v340
    %v342 = vpop.f32.mrf.mxu0
    %343 = vdwg.mxu0
    %344 = vmatpush.bf16.msra.mxu0 %v329
    %345 = vmatpush.bf16.msra.mxu0 %v327
    %346 = vmatpush.bf16.msra.mxu0 %v325
    %347 = vmatpush.bf16.msra.mxu0 %v323
    %348 = vmatpush.bf16.msra.mxu0 %v321
    %349 = vmatpush.bf16.msra.mxu0 %v319
    %350 = vmatpush.bf16.msra.mxu0 %v317
    %351 = vmatpush.bf16.msra.mxu0 %v315
    %352 = vmatmul.bf16.gmra.mxu0 %v330
    %v353 = vpop.f32.mrf.mxu0
    %v354 = vadd.f32 0.0, %v353
    %v355 = vpop.f32.mrf.mxu0
    %356 = vdwg.mxu0
    %v357 = vld [vmem:[#allocation4] sm:$0xff]
    %v358 = vld [vmem:[%s5] sm:$0xff]
    %vm359 = vcmp.eq.s32.totalorder %v165, 0
    %v360 = vsel %vm359, %v357, 0.0
    %vm361 = vcmask 64512
    %v362 = vsel %vm361, %v360, 0.0
    %363 = vadd.xlane.f32.xlu0 %v362
    %v364 = vpop.xlane.xlu0 %363
    %v365 = vsel %vm359, %v358, 0
    %v366 = vsel %vm361, %v365, 0
    %v367 = vand.u32 %v366, 65535
    %v368 = vshrl.u32 %v366, 16
    %v369 = vcvt.s32.f32 %v367
    %v370 = vcvt.s32.f32 %v368
    %371 = vadd.xlane.f32.xlu0 %v369
    %v372 = vpop.xlane.xlu0 %371
    %373 = vadd.xlane.f32.xlu0 %v370
    %v374 = vpop.xlane.xlu0 %373
    %v375 = vcvt.f32.s32 %v372
    %v376 = vcvt.f32.s32 %v374
    %v377 = vshll.u32 %v376, 16
    %v378 = vadd.s32 %v377, %v375
    %vm379 = vcmp.eq.s32.totalorder %v378, %v168
    %vm380 = vcmp.eq.s32.totalorder %v378, %v169
    %v381 = vsel %vm379, %v364, 0.0
    %v382 = vsel %vm380, %v364, 0.0
    %v383 = vadd.f32 %v381, 0.0
    %v384 = vadd.f32 %v382, 0.0
    %vm385 = vcmp.eq.s32.totalorder %v165, 1
    %v386 = vsel %vm385, %v357, 0.0
    %v387 = vsel %vm361, %v386, 0.0
    %388 = vadd.xlane.f32.xlu0 %v387
    %v389 = vpop.xlane.xlu0 %388
    %v390 = vsel %vm385, %v358, 0
    %v391 = vsel %vm361, %v390, 0
    %v392 = vand.u32 %v391, 65535
    %v393 = vshrl.u32 %v391, 16
    %v394 = vcvt.s32.f32 %v392
    %v395 = vcvt.s32.f32 %v393
    %396 = vadd.xlane.f32.xlu0 %v394
    %v397 = vpop.xlane.xlu0 %396
    %398 = vadd.xlane.f32.xlu0 %v395
    %v399 = vpop.xlane.xlu0 %398
    %v400 = vcvt.f32.s32 %v397
    %v401 = vcvt.f32.s32 %v399
    %v402 = vshll.u32 %v401, 16
    %v403 = vadd.s32 %v402, %v400
    %vm404 = vcmp.eq.s32.totalorder %v403, %v168
    %vm405 = vcmp.eq.s32.totalorder %v403, %v169
    %v406 = vsel %vm404, %v389, 0.0
    %v407 = vsel %vm405, %v389, 0.0
    %v408 = vadd.f32 %v383, %v406
    %v409 = vadd.f32 %v384, %v407
    %vm410 = vcmp.eq.s32.totalorder %v165, 2
    %v411 = vsel %vm410, %v357, 0.0
    %v412 = vsel %vm361, %v411, 0.0
    %413 = vadd.xlane.f32.xlu0 %v412
    %v414 = vpop.xlane.xlu0 %413
    %v415 = vsel %vm410, %v358, 0
    %v416 = vsel %vm361, %v415, 0
    %v417 = vand.u32 %v416, 65535
    %v418 = vshrl.u32 %v416, 16
    %v419 = vcvt.s32.f32 %v417
    %v420 = vcvt.s32.f32 %v418
    %421 = vadd.xlane.f32.xlu0 %v419
    %v422 = vpop.xlane.xlu0 %421
    %423 = vadd.xlane.f32.xlu0 %v420
    %v424 = vpop.xlane.xlu0 %423
    %v425 = vcvt.f32.s32 %v422
    %v426 = vcvt.f32.s32 %v424
    %v427 = vshll.u32 %v426, 16
    %v428 = vadd.s32 %v427, %v425
    %vm429 = vcmp.eq.s32.totalorder %v428, %v168
    %vm430 = vcmp.eq.s32.totalorder %v428, %v169
    %v431 = vsel %vm429, %v414, 0.0
    %v432 = vsel %vm430, %v414, 0.0
    %v433 = vadd.f32 %v408, %v431
    %v434 = vadd.f32 %v409, %v432
    %vm435 = vcmp.eq.s32.totalorder %v165, 3
    %v436 = vsel %vm435, %v357, 0.0
    %v437 = vsel %vm361, %v436, 0.0
    %438 = vadd.xlane.f32.xlu0 %v437
    %v439 = vpop.xlane.xlu0 %438
    %v440 = vsel %vm435, %v358, 0
    %v441 = vsel %vm361, %v440, 0
    %v442 = vand.u32 %v441, 65535
    %v443 = vshrl.u32 %v441, 16
    %v444 = vcvt.s32.f32 %v442
    %v445 = vcvt.s32.f32 %v443
    %446 = vadd.xlane.f32.xlu0 %v444
    %v447 = vpop.xlane.xlu0 %446
    %448 = vadd.xlane.f32.xlu0 %v445
    %v449 = vpop.xlane.xlu0 %448
    %v450 = vcvt.f32.s32 %v447
    %v451 = vcvt.f32.s32 %v449
    %v452 = vshll.u32 %v451, 16
    %v453 = vadd.s32 %v452, %v450
    %vm454 = vcmp.eq.s32.totalorder %v453, %v168
    %vm455 = vcmp.eq.s32.totalorder %v453, %v169
    %v456 = vsel %vm454, %v439, 0.0
    %v457 = vsel %vm455, %v439, 0.0
    %v458 = vadd.f32 %v433, %v456
    %v459 = vadd.f32 %v434, %v457
    %vm460 = vcmp.eq.s32.totalorder %v165, 4
    %v461 = vsel %vm460, %v357, 0.0
    %v462 = vsel %vm361, %v461, 0.0
    %463 = vadd.xlane.f32.xlu0 %v462
    %v464 = vpop.xlane.xlu0 %463
    %v465 = vsel %vm460, %v358, 0
    %v466 = vsel %vm361, %v465, 0
    %v467 = vand.u32 %v466, 65535
    %v468 = vshrl.u32 %v466, 16
    %v469 = vcvt.s32.f32 %v467
    %v470 = vcvt.s32.f32 %v468
    %471 = vadd.xlane.f32.xlu0 %v469
    %v472 = vpop.xlane.xlu0 %471
    %473 = vadd.xlane.f32.xlu0 %v470
    %v474 = vpop.xlane.xlu0 %473
    %v475 = vcvt.f32.s32 %v472
    %v476 = vcvt.f32.s32 %v474
    %v477 = vshll.u32 %v476, 16
    %v478 = vadd.s32 %v477, %v475
    %vm479 = vcmp.eq.s32.totalorder %v478, %v168
    %vm480 = vcmp.eq.s32.totalorder %v478, %v169
    %v481 = vsel %vm479, %v464, 0.0
    %v482 = vsel %vm480, %v464, 0.0
    %v483 = vadd.f32 %v458, %v481
    %v484 = vadd.f32 %v459, %v482
    %vm485 = vcmp.eq.s32.totalorder %v165, 5
    %v486 = vsel %vm485, %v357, 0.0
    %v487 = vsel %vm361, %v486, 0.0
    %488 = vadd.xlane.f32.xlu0 %v487
    %v489 = vpop.xlane.xlu0 %488
    %v490 = vsel %vm485, %v358, 0
    %v491 = vsel %vm361, %v490, 0
    %v492 = vand.u32 %v491, 65535
    %v493 = vshrl.u32 %v491, 16
    %v494 = vcvt.s32.f32 %v492
    %v495 = vcvt.s32.f32 %v493
    %496 = vadd.xlane.f32.xlu0 %v494
    %v497 = vpop.xlane.xlu0 %496
    %498 = vadd.xlane.f32.xlu0 %v495
    %v499 = vpop.xlane.xlu0 %498
    %v500 = vcvt.f32.s32 %v497
    %v501 = vcvt.f32.s32 %v499
    %v502 = vshll.u32 %v501, 16
    %v503 = vadd.s32 %v502, %v500
    %vm504 = vcmp.eq.s32.totalorder %v503, %v168
    %vm505 = vcmp.eq.s32.totalorder %v503, %v169
    %v506 = vsel %vm504, %v489, 0.0
    %v507 = vsel %vm505, %v489, 0.0
    %v508 = vadd.f32 %v483, %v506
    %v509 = vadd.f32 %v484, %v507
    %vm510 = vcmp.eq.s32.totalorder %v165, 6
    %v511 = vsel %vm510, %v357, 0.0
    %v512 = vsel %vm361, %v511, 0.0
    %513 = vadd.xlane.f32.xlu0 %v512
    %v514 = vpop.xlane.xlu0 %513
    %v515 = vsel %vm510, %v358, 0
    %v516 = vsel %vm361, %v515, 0
    %v517 = vand.u32 %v516, 65535
    %v518 = vshrl.u32 %v516, 16
    %v519 = vcvt.s32.f32 %v517
    %v520 = vcvt.s32.f32 %v518
    %521 = vadd.xlane.f32.xlu0 %v519
    %v522 = vpop.xlane.xlu0 %521
    %523 = vadd.xlane.f32.xlu0 %v520
    %v524 = vpop.xlane.xlu0 %523
    %v525 = vcvt.f32.s32 %v522
    %v526 = vcvt.f32.s32 %v524
    %v527 = vshll.u32 %v526, 16
    %v528 = vadd.s32 %v527, %v525
    %vm529 = vcmp.eq.s32.totalorder %v528, %v168
    %vm530 = vcmp.eq.s32.totalorder %v528, %v169
    %v531 = vsel %vm529, %v514, 0.0
    %v532 = vsel %vm530, %v514, 0.0
    %v533 = vadd.f32 %v508, %v531
    %v534 = vadd.f32 %v509, %v532
    %vm535 = vcmp.eq.s32.totalorder %v165, 7
    %v536 = vsel %vm535, %v357, 0.0
    %v537 = vsel %vm361, %v536, 0.0
    %538 = vadd.xlane.f32.xlu0 %v537
    %v539 = vpop.xlane.xlu0 %538
    %v540 = vsel %vm535, %v358, 0
    %v541 = vsel %vm361, %v540, 0
    %v542 = vand.u32 %v541, 65535
    %v543 = vshrl.u32 %v541, 16
    %v544 = vcvt.s32.f32 %v542
    %v545 = vcvt.s32.f32 %v543
    %546 = vadd.xlane.f32.xlu0 %v544
    %v547 = vpop.xlane.xlu0 %546
    %548 = vadd.xlane.f32.xlu0 %v545
    %v549 = vpop.xlane.xlu0 %548
    %v550 = vcvt.f32.s32 %v547
    %v551 = vcvt.f32.s32 %v549
    %v552 = vshll.u32 %v551, 16
    %v553 = vadd.s32 %v552, %v550
    %vm554 = vcmp.eq.s32.totalorder %v553, %v168
    %vm555 = vcmp.eq.s32.totalorder %v553, %v169
    %v556 = vsel %vm554, %v539, 0.0
    %v557 = vsel %vm555, %v539, 0.0
    %v558 = vadd.f32 %v533, %v556
    %v559 = vadd.f32 %v534, %v557
    %v560 = vld [vmem:[#allocation2] sm:$0xff]
    %v561 = vsub.f32 %v341, %v558
    %v562 = vsub.f32 %v354, %v559
    %564 = vset.pattern.permute.xlu0 0
    %565 = vperm.xlu0 %564, %v560
    %v566 = vpop.permute.xlu0 %565
    %v568 = vmul.f32 %v566, %v561
    %v569 = vmul.f32 %v566, %v562
    %v570 = vadd.f32 %v558, %v568
    %v571 = vadd.f32 %v559, %v569
    %572 = vst [vmem:[#allocation5] sm:$0xff] %v570
    %573 = vst [vmem:[#allocation5 + $0x8] sm:$0xff] %v571
    // Predicated region
    $region30: #{tpu_custom_call.1} parent=1 // pred_check
      _
    $region31: #{tpu_custom_call.1} parent=1 // pred_check_branch
      %575 = sbr.rel (0) target = $region33
    $region32: #{tpu_custom_call.1} parent=1 // pred_region
      %577 = vsyncadd [#allocation6], 0
      %s579 = sshll.u32 [#allocation5], 4
      %s580 = int_to_ptr.vmem [resolvable:$true] %s579
      %s581 = sshll.u32 %s6, 4
      %s582 = int_to_ptr.hbm [resolvable:$true] %s581
      %584 = dma.vmem_to_hbm [thread:$0]  %s580, 256, %s582, [#allocation6]
    $region33: #{tpu_custom_call.1} parent=1 // pred_fallthru
      _
    // Predicated region
    $region34: #{tpu_custom_call.1} parent=1 // pred_check
      _
    $region35: #{tpu_custom_call.1} parent=1 // pred_check_branch
      %586 = sbr.rel (0) target = $region37
    $region36: #{tpu_custom_call.1} parent=1 // pred_region
      %588 = dma.done [#allocation6], 256
    $region37: #{tpu_custom_call.1} parent=1 // pred_fallthru
      _
    %589 = vsyncpa [#allocation6], 1

</llo_original>
